<compile_context>
chip_gen: v6e
topology: v6e:2x2x1
jax: 0.10.0
libtpu: 0.0.40
codegen_flags: <defaults>
</compile_context>

<pallas_src>
import functools

import numpy as np

import jax
import jax.numpy as jnp
from jax import lax
from jax.experimental import pallas as pl
from jax.experimental.pallas import tpu as pltpu


# Row offsets of each precomputed matrix inside the packed weight slab (all multiples of 8).
_W1_OFF, _W2_OFF, _W3_OFF, _F1_OFF, _F2_OFF, _W_ROWS = 0, 112, 208, 256, 280, 296


# ------------------------------ fused Pallas kernel ------------------------------

def _cnn2_kernel(x_ref, w_ref, c_ref, o_ref, *, eps):
    f32 = jnp.float32
    n = x_ref.shape[0]

    x = x_ref[...]                                                       # (N, 108), lanes = c*36+h*6+w

    # conv1 (3->6, k3, 6x6->4x4) + ReLU: all taps folded into one (108,96) matrix.
    a1 = jnp.maximum(
        jnp.dot(x, w_ref[_W1_OFF:_W1_OFF + 108, 0:96], preferred_element_type=f32)
        + c_ref[0:1, 0:96], 0.0)                                         # (N, 96)

    # conv2 (6->12, k3, 4x4->2x2) + ReLU.
    a2 = jnp.maximum(
        jnp.dot(a1, w_ref[_W2_OFF:_W2_OFF + 96, 0:48], preferred_element_type=f32)
        + c_ref[1:2, 0:48], 0.0)                                         # (N, 48), lanes = p*12 + ch

    # BatchNorm2d(12): training-mode batch stats, two-pass (mean, then centered variance).
    inv_count = 1.0 / float(n * 4)                                       # N * 2 * 2 elements / channel
    s = jnp.sum(a2, axis=0, keepdims=True)                               # (1, 48) sum over batch rows
    mean12 = (s[:, 0:12] + s[:, 12:24] + s[:, 24:36] + s[:, 36:48]) * inv_count
    mean48 = jnp.concatenate([mean12, mean12, mean12, mean12], axis=1)   # replicate over 4 spatial pos
    cent = a2 - mean48
    ss = jnp.sum(cent * cent, axis=0, keepdims=True)
    var12 = (ss[:, 0:12] + ss[:, 12:24] + ss[:, 24:36] + ss[:, 36:48]) * inv_count
    scale12 = c_ref[2:3, 0:12] * lax.rsqrt(var12 + eps)                  # gamma / sqrt(var + eps)
    scale48 = jnp.concatenate([scale12, scale12, scale12, scale12], axis=1)
    a2bn = cent * scale48 + c_ref[3:4, 0:48]                             # (N, 48)

    # conv3 (12->24, k2, 2x2->1x1) + ReLU.  Output lane = channel (matches .view(-1, 24) flatten).
    a3 = jnp.maximum(
        jnp.dot(a2bn, w_ref[_W3_OFF:_W3_OFF + 48, 0:24], preferred_element_type=f32)
        + c_ref[4:5, 0:24], 0.0)                                         # (N, 24)

    # fc1 (24->16) + ReLU, fc2 (16->3); one contiguous output store.
    h = jnp.maximum(
        jnp.dot(a3, w_ref[_F1_OFF:_F1_OFF + 24, 0:16], preferred_element_type=f32)
        + c_ref[5:6, 0:16], 0.0)
    o_ref[...] = (jnp.dot(h, w_ref[_F2_OFF:_F2_OFF + 16, 0:3], preferred_element_type=f32)
                  + c_ref[6:7, 0:3])


# --------------------------- one-time parameter prep ----------------------------

def prepare_params(p):
    """Hoisted out of the hot path: fold conv taps into dense lane->lane matmul matrices, pack all
    weights into one slab and all small row vectors into a single (8,128) constant block."""
    w1 = np.asarray(p['w1'], np.float32)   # (6, 3, 3, 3)   (O, I, kh, kw)
    w2 = np.asarray(p['w2'], np.float32)   # (12, 6, 3, 3)
    w3 = np.asarray(p['w3'], np.float32)   # (24, 12, 2, 2)

    def conv_mat(w, in_hw, in_lane, out_lane, n_in, n_out):
        o_ch, i_ch, kh, kw = w.shape
        oh_n, ow_n = in_hw[0] - kh + 1, in_hw[1] - kw + 1
        m = np.zeros((n_in, n_out), np.float32)
        for co in range(o_ch):
            for oh in range(oh_n):
                for ow in range(ow_n):
                    ol = out_lane(co, oh, ow)
                    for ci in range(i_ch):
                        for di in range(kh):
                            for dj in range(kw):
                                m[in_lane(ci, oh + di, ow + dj), ol] = w[co, ci, di, dj]
        return m

    # conv1: input lanes follow the raw NCHW flatten (c*36 + h*6 + w) -> no wrapper-side transpose.
    m1 = conv_mat(w1, (6, 6),
                  lambda c, h, w: c * 36 + h * 6 + w,
                  lambda co, oh, ow: (oh * 4 + ow) * 6 + co, 108, 96)
    # conv2: input lanes = conv1 output layout (spatial-major, channel-minor).
    m2 = conv_mat(w2, (4, 4),
                  lambda c, h, w: (h * 4 + w) * 6 + c,
                  lambda co, oh, ow: (oh * 2 + ow) * 12 + co, 96, 48)
    # conv3: 2x2 -> 1x1, output lane = channel.
    m3 = conv_mat(w3, (2, 2),
                  lambda c, h, w: (h * 2 + w) * 12 + c,
                  lambda co, oh, ow: co, 48, 24)

    f1 = np.asarray(p['fc1w'], np.float32).T   # (24, 16)
    f2 = np.asarray(p['fc2w'], np.float32).T   # (16, 3)

    wpack = np.zeros((_W_ROWS, 96), np.float32)
    wpack[_W1_OFF:_W1_OFF + 108, 0:96] = m1
    wpack[_W2_OFF:_W2_OFF + 96, 0:48] = m2
    wpack[_W3_OFF:_W3_OFF + 48, 0:24] = m3
    wpack[_F1_OFF:_F1_OFF + 24, 0:16] = f1
    wpack[_F2_OFF:_F2_OFF + 16, 0:3] = f2

    cpack = np.zeros((8, 128), np.float32)
    cpack[0, 0:96] = np.tile(np.asarray(p['b1'], np.float32), 16)
    cpack[1, 0:48] = np.tile(np.asarray(p['b2'], np.float32), 4)
    cpack[2, 0:12] = np.asarray(p['gamma'], np.float32)
    cpack[3, 0:48] = np.tile(np.asarray(p['beta'], np.float32), 4)
    cpack[4, 0:24] = np.asarray(p['b3'], np.float32)
    cpack[5, 0:16] = np.asarray(p['fc1b'], np.float32)
    cpack[6, 0:3] = np.asarray(p['fc2b'], np.float32)

    return {'wpack': jnp.asarray(wpack), 'cpack': jnp.asarray(cpack)}


# ---------------------------------- wrapper --------------------------------------

@jax.jit
def cnn2_forward(x_nchw, prep):
    n = x_nchw.shape[0]
    # Row-major flatten only — NCHW lane order is baked into the conv1 matrix (no transpose kernel).
    x2d = x_nchw.reshape(n, 108).astype(jnp.float32)
    vmem = pl.BlockSpec(memory_space=pltpu.MemorySpace.VMEM)
    return pl.pallas_call(
        functools.partial(_cnn2_kernel, eps=1e-5),
        out_shape=jax.ShapeDtypeStruct((n, 3), jnp.float32),
        in_specs=[vmem, vmem, vmem],
        out_specs=vmem,
    )(x2d, prep['wpack'], prep['cpack'])


# ----------------------- pure-JAX reference (NCHW, for checking) -----------------

def cnn2_reference(x_nchw, p):
    def conv(x, w, b):
        y = lax.conv_general_dilated(x, w, (1, 1), 'VALID',
                                     dimension_numbers=('NCHW', 'OIHW', 'NCHW'))
        return y + b.reshape(1, -1, 1, 1)

    x = jax.nn.relu(conv(x_nchw, p['w1'], p['b1']))
    x = jax.nn.relu(conv(x, p['w2'], p['b2']))
    mu = jnp.mean(x, axis=(0, 2, 3), keepdims=True)
    var = jnp.mean((x - mu) ** 2, axis=(0, 2, 3), keepdims=True)
    x = (x - mu) / jnp.sqrt(var + 1e-5) * p['gamma'].reshape(1, -1, 1, 1) \
        + p['beta'].reshape(1, -1, 1, 1)
    x = jax.nn.relu(conv(x, p['w3'], p['b3']))
    x = x.reshape(x.shape[0], -1)
    x = jax.nn.relu(x @ p['fc1w'].T + p['fc1b'])
    return x @ p['fc2w'].T + p['fc2b']


# ------------------------------ params / main --------------------------------

def init_params(key):
    ks = jax.random.split(key, 12)
    n = lambda k, shape, s=0.1: (s * jax.random.normal(k, shape)).astype(jnp.float32)
    return {
        'w1': n(ks[0], (6, 3, 3, 3)),   'b1': n(ks[1], (6,)),
        'w2': n(ks[2], (12, 6, 3, 3)),  'b2': n(ks[3], (12,)),
        'gamma': (1.0 + 0.1 * jax.random.normal(ks[4], (12,))).astype(jnp.float32),
        'beta': n(ks[5], (12,)),
        'w3': n(ks[6], (24, 12, 2, 2)), 'b3': n(ks[7], (24,)),
        'fc1w': n(ks[8], (16, 24)),     'fc1b': n(ks[9], (16,)),
        'fc2w': n(ks[10], (3, 16)),     'fc2b': n(ks[11], (3,)),
    }


if __name__ == "__main__":
    key = jax.random.PRNGKey(0)
    kx, kp = jax.random.split(key)
    # patch_type='tip' -> input spatial (6, 6), 3 channels; small batch of 2.
    x = jax.random.normal(kx, (2, 3, 6, 6), dtype=jnp.float32)
    params = init_params(kp)
    prep = prepare_params(params)          # one-time weight re-layout (outside hot path)

    out = jax.block_until_ready(cnn2_forward(x, prep))
    ref = jax.block_until_ready(cnn2_reference(x, params))

    assert out.shape == (2, 3), out.shape
    assert bool(jnp.all(jnp.isfinite(out)))
    assert bool(jnp.allclose(out, ref, atol=1e-4, rtol=1e-4)), \
        f"max abs err {float(jnp.max(jnp.abs(out - ref)))}"
    print("KERNEL_OK")
</pallas_src>

<mosaic_0001>
module attributes {stable_mosaic.version = 11 : i64} {
  func.func @_cnn2_kernel(%arg0: memref<2x108xf32, #tpu.memory_space<vmem>>, %arg1: memref<296x96xf32, #tpu.memory_space<vmem>>, %arg2: memref<8x128xf32, #tpu.memory_space<vmem>>, %arg3: memref<2x3xf32, #tpu.memory_space<vmem>>) attributes {dimension_semantics = [], scalar_prefetch = 0 : i64, scratch_operands = 0 : i64, tpu.core_type = #tpu.core_type<tc>} {
    %c0 = arith.constant 0 : index
    %c0_0 = arith.constant 0 : index
    %0 = vector.load %arg0[%c0, %c0_0] : memref<2x108xf32, #tpu.memory_space<vmem>>, vector<2x108xf32>
    %c0_1 = arith.constant 0 : index
    %c0_2 = arith.constant 0 : index
    %1 = vector.load %arg1[%c0_1, %c0_2] : memref<296x96xf32, #tpu.memory_space<vmem>>, vector<108x96xf32>
    %cst = arith.constant dense<0.000000e+00> : vector<2x96xf32>
    %2 = tpu.matmul %0, %1, %cst {dimension_numbers = #tpu.dot_dimension_numbers<[1], [0], [0], [1], [0, 0, 1, 1], [], []>} : vector<2x108xf32>, vector<108x96xf32>, vector<2x96xf32> -> vector<2x96xf32>
    %c0_3 = arith.constant 0 : index
    %c0_4 = arith.constant 0 : index
    %3 = vector.load %arg2[%c0_3, %c0_4] : memref<8x128xf32, #tpu.memory_space<vmem>>, vector<1x96xf32>
    %4 = vector.broadcast %3 : vector<1x96xf32> to vector<2x96xf32>
    %5 = arith.addf %2, %4 : vector<2x96xf32>
    %cst_5 = arith.constant 0.000000e+00 : f32
    %6 = vector.broadcast %cst_5 : f32 to vector<2x96xf32>
    %7 = arith.maximumf %5, %6 : vector<2x96xf32>
    %c112 = arith.constant 112 : index
    %c0_6 = arith.constant 0 : index
    %8 = vector.load %arg1[%c112, %c0_6] : memref<296x96xf32, #tpu.memory_space<vmem>>, vector<96x48xf32>
    %cst_7 = arith.constant dense<0.000000e+00> : vector<2x48xf32>
    %9 = tpu.matmul %7, %8, %cst_7 {dimension_numbers = #tpu.dot_dimension_numbers<[1], [0], [0], [1], [0, 0, 1, 1], [], []>} : vector<2x96xf32>, vector<96x48xf32>, vector<2x48xf32> -> vector<2x48xf32>
    %c1 = arith.constant 1 : index
    %c0_8 = arith.constant 0 : index
    %10 = vector.load %arg2[%c1, %c0_8] : memref<8x128xf32, #tpu.memory_space<vmem>>, vector<1x48xf32>
    %11 = vector.broadcast %10 : vector<1x48xf32> to vector<2x48xf32>
    %12 = arith.addf %9, %11 : vector<2x48xf32>
    %cst_9 = arith.constant 0.000000e+00 : f32
    %13 = vector.broadcast %cst_9 : f32 to vector<2x48xf32>
    %14 = arith.maximumf %12, %13 : vector<2x48xf32>
    %cst_10 = arith.constant dense<0.000000e+00> : vector<48xf32>
    %15 = vector.multi_reduction <add>, %14, %cst_10 [0] : vector<2x48xf32> to vector<48xf32>
    %16 = vector.shape_cast %15 : vector<48xf32> to vector<1x48xf32>
    %17 = vector.extract_strided_slice %16 {offsets = [0, 0], sizes = [1, 12], strides = [1, 1]} : vector<1x48xf32> to vector<1x12xf32>
    %18 = vector.extract_strided_slice %16 {offsets = [0, 12], sizes = [1, 12], strides = [1, 1]} : vector<1x48xf32> to vector<1x12xf32>
    %19 = arith.addf %17, %18 : vector<1x12xf32>
    %20 = vector.extract_strided_slice %16 {offsets = [0, 24], sizes = [1, 12], strides = [1, 1]} : vector<1x48xf32> to vector<1x12xf32>
    %21 = arith.addf %19, %20 : vector<1x12xf32>
    %22 = vector.extract_strided_slice %16 {offsets = [0, 36], sizes = [1, 12], strides = [1, 1]} : vector<1x48xf32> to vector<1x12xf32>
    %23 = arith.addf %21, %22 : vector<1x12xf32>
    %cst_11 = arith.constant 1.250000e-01 : f32
    %24 = vector.broadcast %cst_11 : f32 to vector<1x12xf32>
    %25 = arith.mulf %23, %24 : vector<1x12xf32>
    %26 = tpu.concatenate %25, %25, %25, %25 in 1 : vector<1x12xf32>, vector<1x12xf32>, vector<1x12xf32>, vector<1x12xf32> -> vector<1x48xf32>
    %27 = vector.broadcast %26 : vector<1x48xf32> to vector<2x48xf32>
    %28 = arith.subf %14, %27 : vector<2x48xf32>
    %29 = arith.mulf %28, %28 : vector<2x48xf32>
    %cst_12 = arith.constant dense<0.000000e+00> : vector<48xf32>
    %30 = vector.multi_reduction <add>, %29, %cst_12 [0] : vector<2x48xf32> to vector<48xf32>
    %31 = vector.shape_cast %30 : vector<48xf32> to vector<1x48xf32>
    %32 = vector.extract_strided_slice %31 {offsets = [0, 0], sizes = [1, 12], strides = [1, 1]} : vector<1x48xf32> to vector<1x12xf32>
    %33 = vector.extract_strided_slice %31 {offsets = [0, 12], sizes = [1, 12], strides = [1, 1]} : vector<1x48xf32> to vector<1x12xf32>
    %34 = arith.addf %32, %33 : vector<1x12xf32>
    %35 = vector.extract_strided_slice %31 {offsets = [0, 24], sizes = [1, 12], strides = [1, 1]} : vector<1x48xf32> to vector<1x12xf32>
    %36 = arith.addf %34, %35 : vector<1x12xf32>
    %37 = vector.extract_strided_slice %31 {offsets = [0, 36], sizes = [1, 12], strides = [1, 1]} : vector<1x48xf32> to vector<1x12xf32>
    %38 = arith.addf %36, %37 : vector<1x12xf32>
    %cst_13 = arith.constant 1.250000e-01 : f32
    %39 = vector.broadcast %cst_13 : f32 to vector<1x12xf32>
    %40 = arith.mulf %38, %39 : vector<1x12xf32>
    %c2 = arith.constant 2 : index
    %c0_14 = arith.constant 0 : index
    %41 = vector.load %arg2[%c2, %c0_14] : memref<8x128xf32, #tpu.memory_space<vmem>>, vector<1x12xf32>
    %cst_15 = arith.constant 9.99999974E-6 : f32
    %42 = vector.broadcast %cst_15 : f32 to vector<1x12xf32>
    %43 = arith.addf %40, %42 : vector<1x12xf32>
    %44 = math.rsqrt %43 : vector<1x12xf32>
    %45 = arith.mulf %41, %44 : vector<1x12xf32>
    %46 = tpu.concatenate %45, %45, %45, %45 in 1 : vector<1x12xf32>, vector<1x12xf32>, vector<1x12xf32>, vector<1x12xf32> -> vector<1x48xf32>
    %47 = vector.broadcast %46 : vector<1x48xf32> to vector<2x48xf32>
    %48 = arith.mulf %28, %47 : vector<2x48xf32>
    %c3 = arith.constant 3 : index
    %c0_16 = arith.constant 0 : index
    %49 = vector.load %arg2[%c3, %c0_16] : memref<8x128xf32, #tpu.memory_space<vmem>>, vector<1x48xf32>
    %50 = vector.broadcast %49 : vector<1x48xf32> to vector<2x48xf32>
    %51 = arith.addf %48, %50 : vector<2x48xf32>
    %c208 = arith.constant 208 : index
    %c0_17 = arith.constant 0 : index
    %52 = vector.load %arg1[%c208, %c0_17] : memref<296x96xf32, #tpu.memory_space<vmem>>, vector<48x24xf32>
    %cst_18 = arith.constant dense<0.000000e+00> : vector<2x24xf32>
    %53 = tpu.matmul %51, %52, %cst_18 {dimension_numbers = #tpu.dot_dimension_numbers<[1], [0], [0], [1], [0, 0, 1, 1], [], []>} : vector<2x48xf32>, vector<48x24xf32>, vector<2x24xf32> -> vector<2x24xf32>
    %c4 = arith.constant 4 : index
    %c0_19 = arith.constant 0 : index
    %54 = vector.load %arg2[%c4, %c0_19] : memref<8x128xf32, #tpu.memory_space<vmem>>, vector<1x24xf32>
    %55 = vector.broadcast %54 : vector<1x24xf32> to vector<2x24xf32>
    %56 = arith.addf %53, %55 : vector<2x24xf32>
    %cst_20 = arith.constant 0.000000e+00 : f32
    %57 = vector.broadcast %cst_20 : f32 to vector<2x24xf32>
    %58 = arith.maximumf %56, %57 : vector<2x24xf32>
    %c256 = arith.constant 256 : index
    %c0_21 = arith.constant 0 : index
    %59 = vector.load %arg1[%c256, %c0_21] : memref<296x96xf32, #tpu.memory_space<vmem>>, vector<24x16xf32>
    %cst_22 = arith.constant dense<0.000000e+00> : vector<2x16xf32>
    %60 = tpu.matmul %58, %59, %cst_22 {dimension_numbers = #tpu.dot_dimension_numbers<[1], [0], [0], [1], [0, 0, 1, 1], [], []>} : vector<2x24xf32>, vector<24x16xf32>, vector<2x16xf32> -> vector<2x16xf32>
    %c5 = arith.constant 5 : index
    %c0_23 = arith.constant 0 : index
    %61 = vector.load %arg2[%c5, %c0_23] : memref<8x128xf32, #tpu.memory_space<vmem>>, vector<1x16xf32>
    %62 = vector.broadcast %61 : vector<1x16xf32> to vector<2x16xf32>
    %63 = arith.addf %60, %62 : vector<2x16xf32>
    %cst_24 = arith.constant 0.000000e+00 : f32
    %64 = vector.broadcast %cst_24 : f32 to vector<2x16xf32>
    %65 = arith.maximumf %63, %64 : vector<2x16xf32>
    %c280 = arith.constant 280 : index
    %c0_25 = arith.constant 0 : index
    %66 = vector.load %arg1[%c280, %c0_25] : memref<296x96xf32, #tpu.memory_space<vmem>>, vector<16x3xf32>
    %cst_26 = arith.constant dense<0.000000e+00> : vector<2x3xf32>
    %67 = tpu.matmul %65, %66, %cst_26 {dimension_numbers = #tpu.dot_dimension_numbers<[1], [0], [0], [1], [0, 0, 1, 1], [], []>} : vector<2x16xf32>, vector<16x3xf32>, vector<2x3xf32> -> vector<2x3xf32>
    %c6 = arith.constant 6 : index
    %c0_27 = arith.constant 0 : index
    %68 = vector.load %arg2[%c6, %c0_27] : memref<8x128xf32, #tpu.memory_space<vmem>>, vector<1x3xf32>
    %69 = vector.broadcast %68 : vector<1x3xf32> to vector<2x3xf32>
    %70 = arith.addf %67, %69 : vector<2x3xf32>
    %c0_28 = arith.constant 0 : index
    %c0_29 = arith.constant 0 : index
    %71 = vector.load %arg3[%c0_28, %c0_29] : memref<2x3xf32, #tpu.memory_space<vmem>>, vector<2x3xf32>
    tpu.vector_store %arg3[%c0_28, %c0_29], %70 {strides = array<i32>} : memref<2x3xf32, #tpu.memory_space<vmem>>, vector<2x3xf32>,
    return
  }
}

</mosaic_0001>

<llo_original>
// kernel: cnn2_forward.1
$region0: #{cnn2_forward.1}
  #allocation0 [shape = 'u32[]', space=smem, size = 0x4, offset = 0x4, fixed_abs, tag = 'smem constant byte address 0x4 - core index']
  #allocation1 [shape = 'u32[144,128]{1,0:T(1,128)}', space=vmem, size = 0x12000, scoped, tag = 'internal scratch']
  %s0 = inlined_call_operand.vmem [shape: f32[2,108], index: 0, kind: input, shape index: {}]
  %s1 = inlined_call_operand.vmem [shape: f32[296,96], index: 1, kind: input, shape index: {}]
  %s2 = inlined_call_operand.vmem [shape: f32[8,128], index: 2, kind: input, shape index: {}]
  %s3 = inlined_call_operand.hbm [shape: f32[2,3], index: 3, kind: output, shape index: {}]
  %s4 = sld [smem:[#allocation0]]
  $region22: #{cnn2_forward.1} parent=0
    _
  %s6 = ssub.s32 1, %s4
  %s7 = scalar_select 0, %s6, %s4
  $region1: #{cnn2_forward.1} parent=0
    #allocation2 [shape = 'u8[1024]{0}', space=vmem, size = 0x400, scoped, tag = 'output window, operand 0, single buffered']
    #allocation3 [shape = 's32[1]{0}', space=sflag, size = 0x4, scoped, tag = 'scoped memory for cnn2_forward.1']
    %8 = vsyncpa [#allocation3], 0
    // Predicated region
    $region2: #{cnn2_forward.1} parent=1 // pred_check
      _
    $region3: #{cnn2_forward.1} parent=1 // pred_check_branch
      %10 = sbr.rel (0) target = $region5
    $region4: #{cnn2_forward.1} parent=1 // pred_region
      _
    $region5: #{cnn2_forward.1} parent=1 // pred_fallthru
      _
    // Predicated region
    $region6: #{cnn2_forward.1} parent=1 // pred_check
      _
    $region7: #{cnn2_forward.1} parent=1 // pred_check_branch
      %12 = sbr.rel (0) target = $region9
    $region8: #{cnn2_forward.1} parent=1 // pred_region
      _
    $region9: #{cnn2_forward.1} parent=1 // pred_fallthru
      _
    // Predicated region
    $region10: #{cnn2_forward.1} parent=1 // pred_check
      _
    $region11: #{cnn2_forward.1} parent=1 // pred_check_branch
      %14 = sbr.rel (0) target = $region13
    $region12: #{cnn2_forward.1} parent=1 // pred_region
      _
    $region13: #{cnn2_forward.1} parent=1 // pred_fallthru
      _
    %v15 = vld [vmem:[%s0] sm:$0x3]
    %v16 = vld [vmem:[%s1] sm:$0xff]
    %v17 = vld [vmem:[%s1 + $0x8] sm:$0xff]
    %v18 = vld [vmem:[%s1 + $0x10] sm:$0xff]
    %v19 = vld [vmem:[%s1 + $0x18] sm:$0xff]
    %v20 = vld [vmem:[%s1 + $0x20] sm:$0xff]
    %v21 = vld [vmem:[%s1 + $0x28] sm:$0xff]
    %v22 = vld [vmem:[%s1 + $0x30] sm:$0xff]
    %v23 = vld [vmem:[%s1 + $0x38] sm:$0xff]
    %v24 = vld [vmem:[%s1 + $0x40] sm:$0xff]
    %v25 = vld [vmem:[%s1 + $0x48] sm:$0xff]
    %v26 = vld [vmem:[%s1 + $0x50] sm:$0xff]
    %v27 = vld [vmem:[%s1 + $0x58] sm:$0xff]
    %v28 = vld [vmem:[%s1 + $0x60] sm:$0xff]
    %v29 = vld [vmem:[%s1 + $0x68] sm:$0xf]
    %v30 = vld [vmem:[%s2] sm:$0x1]
    %v31 = vlaneseq
    %v32 = vshrl.u32 %v31, 7
    %v33 = vsub.s32 0, %v32
    %v34 = vrot.slane %v30, %v33
    %vm35 = vcmask 883712
    %v37 = vsel %vm35, %v15, 0
    %vm39 = vcmask 1043456
    %v41 = vsel %vm39, %v29, 0
    %43 = vmatprep.subr.mxu0 0.0
    %44 = vmatpush1.msra.mxu0 0.0
    %45 = vmatprep.subr.mxu0 0.0
    %46 = vmatpush1.msra.mxu0 0.0
    %47 = vmatprep.subr.mxu0 0.0
    %48 = vmatpush1.msra.mxu0 %v41
    %49 = vmatprep.subr.mxu0 0.0
    %50 = vmatpush1.msra.mxu0 %v28
    %51 = vmatprep.subr.mxu0 0.0
    %52 = vmatpush1.msra.mxu0 %v27
    %53 = vmatprep.subr.mxu0 0.0
    %54 = vmatpush1.msra.mxu0 %v26
    %55 = vmatprep.subr.mxu0 0.0
    %56 = vmatpush1.msra.mxu0 %v25
    %57 = vmatprep.subr.mxu0 0.0
    %58 = vmatpush1.msra.mxu0 %v24
    %59 = vmatprep.subr.mxu0 0.0
    %60 = vmatpush1.msra.mxu0 %v23
    %61 = vmatprep.subr.mxu0 0.0
    %62 = vmatpush1.msra.mxu0 %v22
    %63 = vmatprep.subr.mxu0 0.0
    %64 = vmatpush1.msra.mxu0 %v21
    %65 = vmatprep.subr.mxu0 0.0
    %66 = vmatpush1.msra.mxu0 %v20
    %67 = vmatprep.subr.mxu0 0.0
    %68 = vmatpush1.msra.mxu0 %v19
    %69 = vmatprep.subr.mxu0 0.0
    %70 = vmatpush1.msra.mxu0 %v18
    %71 = vmatprep.subr.mxu0 0.0
    %72 = vmatpush1.msra.mxu0 %v17
    %73 = vmatprep.subr.mxu0 0.0
    %74 = vmatpush1.msra.mxu0 %v16
    %75 = vmatprep.subr.mxu0 0.0
    %76 = vmatpush2.msra.mxu0 0.0
    %77 = vmatprep.subr.mxu0 0.0
    %78 = vmatpush2.msra.mxu0 0.0
    %79 = vmatprep.subr.mxu0 0.0
    %80 = vmatpush2.msra.mxu0 0.0
    %81 = vmatprep.subr.mxu0 0.0
    %82 = vmatpush2.msra.mxu0 0.0
    %83 = vmatprep.subr.mxu0 0.0
    %84 = vmatpush2.msra.mxu0 0.0
    %85 = vmatprep.subr.mxu0 0.0
    %86 = vmatpush2.msra.mxu0 0.0
    %87 = vmatprep.subr.mxu0 0.0
    %88 = vmatpush2.msra.mxu0 0.0
    %89 = vmatprep.subr.mxu0 0.0
    %90 = vmatpush2.msra.mxu0 0.0
    %91 = vmatprep.subr.mxu0 0.0
    %92 = vmatpush2.msra.mxu0 0.0
    %93 = vmatprep.subr.mxu0 0.0
    %94 = vmatpush2.msra.mxu0 0.0
    %95 = vmatprep.subr.mxu0 0.0
    %96 = vmatpush2.msra.mxu0 0.0
    %97 = vmatprep.subr.mxu0 0.0
    %98 = vmatpush2.msra.mxu0 0.0
    %99 = vmatprep.subr.mxu0 0.0
    %100 = vmatpush2.msra.mxu0 0.0
    %101 = vmatprep.subr.mxu0 0.0
    %102 = vmatpush2.msra.mxu0 0.0
    %103 = vmatprep.subr.mxu0 0.0
    %104 = vmatpush2.msra.mxu0 0.0
    %105 = vmatprep.subr.mxu0 0.0
    %106 = vmatpush2.msra.mxu0 0.0
    %107 = vmatprep.mubr.f32.mxu0 0.0
    %108 = vmatmul.mubr.f32.gmra.mxu0 %v37
    %v109 = vpop.f32.mrf.mxu0
    %v110 = vadd.f32 %v34, %v109
    %v111 = vpop.f32.mrf.mxu0
    %112 = vdwg.mxu0
    %v113 = vmax.f32 %v110, 0.0
    %v114 = vld [vmem:[%s1 + $0x70] sm:$0xff]
    %v115 = vld [vmem:[%s1 + $0x78] sm:$0xff]
    %v116 = vld [vmem:[%s1 + $0x80] sm:$0xff]
    %v117 = vld [vmem:[%s1 + $0x88] sm:$0xff]
    %v118 = vld [vmem:[%s1 + $0x90] sm:$0xff]
    %v119 = vld [vmem:[%s1 + $0x98] sm:$0xff]
    %v120 = vld [vmem:[%s1 + $0xa0] sm:$0xff]
    %v121 = vld [vmem:[%s1 + $0xa8] sm:$0xff]
    %v122 = vld [vmem:[%s1 + $0xb0] sm:$0xff]
    %v123 = vld [vmem:[%s1 + $0xb8] sm:$0xff]
    %v124 = vld [vmem:[%s1 + $0xc0] sm:$0xff]
    %v125 = vld [vmem:[%s1 + $0xc8] sm:$0xff]
    %v126 = vld [vmem:[%s2 + $0x1] sm:$0x1]
    %v127 = vlaneseq
    %v128 = vshrl.u32 %v127, 7
    %v129 = vsub.s32 0, %v128
    %v130 = vrot.slane %v126, %v129
    %vm131 = vcmask 785408
    %v133 = vsel %vm131, %v113, 0
    %135 = vmatprep.subr.mxu0 0.0
    %136 = vmatpush1.msra.mxu0 0.0
    %137 = vmatprep.subr.mxu0 0.0
    %138 = vmatpush1.msra.mxu0 0.0
    %139 = vmatprep.subr.mxu0 0.0
    %140 = vmatpush1.msra.mxu0 0.0
    %141 = vmatprep.subr.mxu0 0.0
    %142 = vmatpush1.msra.mxu0 0.0
    %143 = vmatprep.subr.mxu0 0.0
    %144 = vmatpush1.msra.mxu0 %v125
    %145 = vmatprep.subr.mxu0 0.0
    %146 = vmatpush1.msra.mxu0 %v124
    %147 = vmatprep.subr.mxu0 0.0
    %148 = vmatpush1.msra.mxu0 %v123
    %149 = vmatprep.subr.mxu0 0.0
    %150 = vmatpush1.msra.mxu0 %v122
    %151 = vmatprep.subr.mxu0 0.0
    %152 = vmatpush1.msra.mxu0 %v121
    %153 = vmatprep.subr.mxu0 0.0
    %154 = vmatpush1.msra.mxu0 %v120
    %155 = vmatprep.subr.mxu0 0.0
    %156 = vmatpush1.msra.mxu0 %v119
    %157 = vmatprep.subr.mxu0 0.0
    %158 = vmatpush1.msra.mxu0 %v118
    %159 = vmatprep.subr.mxu0 0.0
    %160 = vmatpush1.msra.mxu0 %v117
    %161 = vmatprep.subr.mxu0 0.0
    %162 = vmatpush1.msra.mxu0 %v116
    %163 = vmatprep.subr.mxu0 0.0
    %164 = vmatpush1.msra.mxu0 %v115
    %165 = vmatprep.subr.mxu0 0.0
    %166 = vmatpush1.msra.mxu0 %v114
    %167 = vmatprep.subr.mxu0 0.0
    %168 = vmatpush2.msra.mxu0 0.0
    %169 = vmatprep.subr.mxu0 0.0
    %170 = vmatpush2.msra.mxu0 0.0
    %171 = vmatprep.subr.mxu0 0.0
    %172 = vmatpush2.msra.mxu0 0.0
    %173 = vmatprep.subr.mxu0 0.0
    %174 = vmatpush2.msra.mxu0 0.0
    %175 = vmatprep.subr.mxu0 0.0
    %176 = vmatpush2.msra.mxu0 0.0
    %177 = vmatprep.subr.mxu0 0.0
    %178 = vmatpush2.msra.mxu0 0.0
    %179 = vmatprep.subr.mxu0 0.0
    %180 = vmatpush2.msra.mxu0 0.0
    %181 = vmatprep.subr.mxu0 0.0
    %182 = vmatpush2.msra.mxu0 0.0
    %183 = vmatprep.subr.mxu0 0.0
    %184 = vmatpush2.msra.mxu0 0.0
    %185 = vmatprep.subr.mxu0 0.0
    %186 = vmatpush2.msra.mxu0 0.0
    %187 = vmatprep.subr.mxu0 0.0
    %188 = vmatpush2.msra.mxu0 0.0
    %189 = vmatprep.subr.mxu0 0.0
    %190 = vmatpush2.msra.mxu0 0.0
    %191 = vmatprep.subr.mxu0 0.0
    %192 = vmatpush2.msra.mxu0 0.0
    %193 = vmatprep.subr.mxu0 0.0
    %194 = vmatpush2.msra.mxu0 0.0
    %195 = vmatprep.subr.mxu0 0.0
    %196 = vmatpush2.msra.mxu0 0.0
    %197 = vmatprep.subr.mxu0 0.0
    %198 = vmatpush2.msra.mxu0 0.0
    %199 = vmatprep.mubr.f32.mxu0 0.0
    %200 = vmatmul.mubr.f32.gmra.mxu0 %v133
    %v201 = vpop.f32.mrf.mxu0
    %v202 = vadd.f32 %v130, %v201
    %v203 = vpop.f32.mrf.mxu0
    %204 = vdwg.mxu0
    %v205 = vmax.f32 %v202, 0.0
    %vm206 = vcmask 386048
    %v207 = vsel %vm206, %v205, 0.0
    %v208 = vrot.slane %v207, 4
    %v209 = vadd.f32 %v207, %v208
    %v210 = vrot.slane %v209, 2
    %v211 = vadd.f32 %v209, %v210
    %v212 = vrot.slane %v211, 1
    %v213 = vadd.f32 %v211, %v212
    %215 = vrot.lane.b32.xlu0 %v213, 116
    %v216 = vpop.permute.xlu0 %215
    %v218 = vadd.f32 %v213, %v216
    %219 = vrot.lane.b32.xlu0 %v213, 104
    %v220 = vpop.permute.xlu0 %219
    %v222 = vadd.f32 %v218, %v220
    %223 = vrot.lane.b32.xlu0 %v213, 92
    %v224 = vpop.permute.xlu0 %223
    %v226 = vadd.f32 %v222, %v224
    %v227 = vmul.f32 %v226, 0.125
    %229 = vrot.lane.b32.xlu0 %v227, 12
    %v230 = vpop.permute.xlu0 %229
    %232 = vrot.lane.b32.xlu0 %v227, 24
    %v233 = vpop.permute.xlu0 %232
    %235 = vrot.lane.b32.xlu0 %v227, 36
    %v236 = vpop.permute.xlu0 %235
    %vm238 = vcmask 97280
    %v239 = vsel %vm238, %v227, %v230
    %vm240 = vcmask 195584
    %v241 = vsel %vm240, %v239, %v233
    %vm242 = vcmask 293888
    %v243 = vsel %vm242, %v241, %v236
    %v244 = vlaneseq
    %v245 = vshrl.u32 %v244, 7
    %v246 = vsub.s32 0, %v245
    %v247 = vrot.slane %v243, %v246
    %v248 = vsub.f32 %v205, %v247
    %v249 = vmul.f32 %v248, %v248
    %v250 = vsel %vm206, %v249, 0.0
    %v251 = vrot.slane %v250, 4
    %v252 = vadd.f32 %v250, %v251
    %v253 = vrot.slane %v252, 2
    %v254 = vadd.f32 %v252, %v253
    %v255 = vrot.slane %v254, 1
    %v256 = vadd.f32 %v254, %v255
    %258 = vrot.lane.b32.xlu0 %v256, 116
    %v259 = vpop.permute.xlu0 %258
    %v261 = vadd.f32 %v256, %v259
    %262 = vrot.lane.b32.xlu0 %v256, 104
    %v263 = vpop.permute.xlu0 %262
    %v265 = vadd.f32 %v261, %v263
    %266 = vrot.lane.b32.xlu0 %v256, 92
    %v267 = vpop.permute.xlu0 %266
    %v269 = vadd.f32 %v265, %v267
    %v270 = vmul.f32 %v269, 0.125
    %v271 = vld [vmem:[%s2 + $0x2] sm:$0x1]
    %v272 = vadd.f32 %v270, 1e-05
    %v273 = vrsqrt.pop %v272
    %v274 = vmul.f32 %v271, %v273
    %276 = vrot.lane.b32.xlu0 %v274, 12
    %v277 = vpop.permute.xlu0 %276
    %279 = vrot.lane.b32.xlu0 %v274, 24
    %v280 = vpop.permute.xlu0 %279
    %282 = vrot.lane.b32.xlu0 %v274, 36
    %v283 = vpop.permute.xlu0 %282
    %v285 = vsel %vm238, %v274, %v277
    %v286 = vsel %vm240, %v285, %v280
    %v287 = vsel %vm242, %v286, %v283
    %v288 = vlaneseq
    %v289 = vshrl.u32 %v288, 7
    %v290 = vsub.s32 0, %v289
    %v291 = vrot.slane %v287, %v290
    %v292 = vmul.f32 %v248, %v291
    %v293 = vld [vmem:[%s2 + $0x3] sm:$0x1]
    %v294 = vlaneseq
    %v295 = vshrl.u32 %v294, 7
    %v296 = vsub.s32 0, %v295
    %v297 = vrot.slane %v293, %v296
    %v298 = vadd.f32 %v292, %v297
    %v299 = vld [vmem:[%s1 + $0xd0] sm:$0xff]
    %v300 = vld [vmem:[%s1 + $0xd8] sm:$0xff]
    %v301 = vld [vmem:[%s1 + $0xe0] sm:$0xff]
    %v302 = vld [vmem:[%s1 + $0xe8] sm:$0xff]
    %v303 = vld [vmem:[%s1 + $0xf0] sm:$0xff]
    %v304 = vld [vmem:[%s1 + $0xf8] sm:$0xff]
    %v305 = vld [vmem:[%s2 + $0x4] sm:$0x1]
    %v306 = vlaneseq
    %v307 = vshrl.u32 %v306, 7
    %v308 = vsub.s32 0, %v307
    %v309 = vrot.slane %v305, %v308
    %vm310 = vcmask 392192
    %v312 = vsel %vm310, %v298, 0
    %314 = vmatprep.subr.mxu0 0.0
    %315 = vmatpush1.msra.mxu0 0.0
    %316 = vmatprep.subr.mxu0 0.0
    %317 = vmatpush1.msra.mxu0 0.0
    %318 = vmatprep.subr.mxu0 0.0
    %319 = vmatpush1.msra.mxu0 0.0
    %320 = vmatprep.subr.mxu0 0.0
    %321 = vmatpush1.msra.mxu0 0.0
    %322 = vmatprep.subr.mxu0 0.0
    %323 = vmatpush1.msra.mxu0 0.0
    %324 = vmatprep.subr.mxu0 0.0
    %325 = vmatpush1.msra.mxu0 0.0
    %326 = vmatprep.subr.mxu0 0.0
    %327 = vmatpush1.msra.mxu0 0.0
    %328 = vmatprep.subr.mxu0 0.0
    %329 = vmatpush1.msra.mxu0 0.0
    %330 = vmatprep.subr.mxu0 0.0
    %331 = vmatpush1.msra.mxu0 0.0
    %332 = vmatprep.subr.mxu0 0.0
    %333 = vmatpush1.msra.mxu0 0.0
    %334 = vmatprep.subr.mxu0 0.0
    %335 = vmatpush1.msra.mxu0 %v304
    %336 = vmatprep.subr.mxu0 0.0
    %337 = vmatpush1.msra.mxu0 %v303
    %338 = vmatprep.subr.mxu0 0.0
    %339 = vmatpush1.msra.mxu0 %v302
    %340 = vmatprep.subr.mxu0 0.0
    %341 = vmatpush1.msra.mxu0 %v301
    %342 = vmatprep.subr.mxu0 0.0
    %343 = vmatpush1.msra.mxu0 %v300
    %344 = vmatprep.subr.mxu0 0.0
    %345 = vmatpush1.msra.mxu0 %v299
    %346 = vmatprep.subr.mxu0 0.0
    %347 = vmatpush2.msra.mxu0 0.0
    %348 = vmatprep.subr.mxu0 0.0
    %349 = vmatpush2.msra.mxu0 0.0
    %350 = vmatprep.subr.mxu0 0.0
    %351 = vmatpush2.msra.mxu0 0.0
    %352 = vmatprep.subr.mxu0 0.0
    %353 = vmatpush2.msra.mxu0 0.0
    %354 = vmatprep.subr.mxu0 0.0
    %355 = vmatpush2.msra.mxu0 0.0
    %356 = vmatprep.subr.mxu0 0.0
    %357 = vmatpush2.msra.mxu0 0.0
    %358 = vmatprep.subr.mxu0 0.0
    %359 = vmatpush2.msra.mxu0 0.0
    %360 = vmatprep.subr.mxu0 0.0
    %361 = vmatpush2.msra.mxu0 0.0
    %362 = vmatprep.subr.mxu0 0.0
    %363 = vmatpush2.msra.mxu0 0.0
    %364 = vmatprep.subr.mxu0 0.0
    %365 = vmatpush2.msra.mxu0 0.0
    %366 = vmatprep.subr.mxu0 0.0
    %367 = vmatpush2.msra.mxu0 0.0
    %368 = vmatprep.subr.mxu0 0.0
    %369 = vmatpush2.msra.mxu0 0.0
    %370 = vmatprep.subr.mxu0 0.0
    %371 = vmatpush2.msra.mxu0 0.0
    %372 = vmatprep.subr.mxu0 0.0
    %373 = vmatpush2.msra.mxu0 0.0
    %374 = vmatprep.subr.mxu0 0.0
    %375 = vmatpush2.msra.mxu0 0.0
    %376 = vmatprep.subr.mxu0 0.0
    %377 = vmatpush2.msra.mxu0 0.0
    %378 = vmatprep.mubr.f32.mxu0 0.0
    %379 = vmatmul.mubr.f32.gmra.mxu0 %v312
    %v380 = vpop.f32.mrf.mxu0
    %v381 = vadd.f32 %v309, %v380
    %v382 = vpop.f32.mrf.mxu0
    %383 = vdwg.mxu0
    %v384 = vmax.f32 %v381, 0.0
    %v385 = vld [vmem:[%s1 + $0x100] sm:$0xff]
    %v386 = vld [vmem:[%s1 + $0x108] sm:$0xff]
    %v387 = vld [vmem:[%s1 + $0x110] sm:$0xff]
    %v388 = vld [vmem:[%s2 + $0x5] sm:$0x1]
    %v389 = vlaneseq
    %v390 = vshrl.u32 %v389, 7
    %v391 = vsub.s32 0, %v390
    %v392 = vrot.slane %v388, %v391
    %v394 = vsel %vm240, %v384, 0
    %396 = vmatprep.subr.mxu0 0.0
    %397 = vmatpush1.msra.mxu0 0.0
    %398 = vmatprep.subr.mxu0 0.0
    %399 = vmatpush1.msra.mxu0 0.0
    %400 = vmatprep.subr.mxu0 0.0
    %401 = vmatpush1.msra.mxu0 0.0
    %402 = vmatprep.subr.mxu0 0.0
    %403 = vmatpush1.msra.mxu0 0.0
    %404 = vmatprep.subr.mxu0 0.0
    %405 = vmatpush1.msra.mxu0 0.0
    %406 = vmatprep.subr.mxu0 0.0
    %407 = vmatpush1.msra.mxu0 0.0
    %408 = vmatprep.subr.mxu0 0.0
    %409 = vmatpush1.msra.mxu0 0.0
    %410 = vmatprep.subr.mxu0 0.0
    %411 = vmatpush1.msra.mxu0 0.0
    %412 = vmatprep.subr.mxu0 0.0
    %413 = vmatpush1.msra.mxu0 0.0
    %414 = vmatprep.subr.mxu0 0.0
    %415 = vmatpush1.msra.mxu0 0.0
    %416 = vmatprep.subr.mxu0 0.0
    %417 = vmatpush1.msra.mxu0 0.0
    %418 = vmatprep.subr.mxu0 0.0
    %419 = vmatpush1.msra.mxu0 0.0
    %420 = vmatprep.subr.mxu0 0.0
    %421 = vmatpush1.msra.mxu0 0.0
    %422 = vmatprep.subr.mxu0 0.0
    %423 = vmatpush1.msra.mxu0 %v387
    %424 = vmatprep.subr.mxu0 0.0
    %425 = vmatpush1.msra.mxu0 %v386
    %426 = vmatprep.subr.mxu0 0.0
    %427 = vmatpush1.msra.mxu0 %v385
    %428 = vmatprep.subr.mxu0 0.0
    %429 = vmatpush2.msra.mxu0 0.0
    %430 = vmatprep.subr.mxu0 0.0
    %431 = vmatpush2.msra.mxu0 0.0
    %432 = vmatprep.subr.mxu0 0.0
    %433 = vmatpush2.msra.mxu0 0.0
    %434 = vmatprep.subr.mxu0 0.0
    %435 = vmatpush2.msra.mxu0 0.0
    %436 = vmatprep.subr.mxu0 0.0
    %437 = vmatpush2.msra.mxu0 0.0
    %438 = vmatprep.subr.mxu0 0.0
    %439 = vmatpush2.msra.mxu0 0.0
    %440 = vmatprep.subr.mxu0 0.0
    %441 = vmatpush2.msra.mxu0 0.0
    %442 = vmatprep.subr.mxu0 0.0
    %443 = vmatpush2.msra.mxu0 0.0
    %444 = vmatprep.subr.mxu0 0.0
    %445 = vmatpush2.msra.mxu0 0.0
    %446 = vmatprep.subr.mxu0 0.0
    %447 = vmatpush2.msra.mxu0 0.0
    %448 = vmatprep.subr.mxu0 0.0
    %449 = vmatpush2.msra.mxu0 0.0
    %450 = vmatprep.subr.mxu0 0.0
    %451 = vmatpush2.msra.mxu0 0.0
    %452 = vmatprep.subr.mxu0 0.0
    %453 = vmatpush2.msra.mxu0 0.0
    %454 = vmatprep.subr.mxu0 0.0
    %455 = vmatpush2.msra.mxu0 0.0
    %456 = vmatprep.subr.mxu0 0.0
    %457 = vmatpush2.msra.mxu0 0.0
    %458 = vmatprep.subr.mxu0 0.0
    %459 = vmatpush2.msra.mxu0 0.0
    %460 = vmatprep.mubr.f32.mxu0 0.0
    %461 = vmatmul.mubr.f32.gmra.mxu0 %v394
    %v462 = vpop.f32.mrf.mxu0
    %v463 = vadd.f32 %v392, %v462
    %v464 = vpop.f32.mrf.mxu0
    %465 = vdwg.mxu0
    %v466 = vmax.f32 %v463, 0.0
    %v467 = vld [vmem:[%s1 + $0x118] sm:$0xff]
    %v468 = vld [vmem:[%s1 + $0x120] sm:$0xff]
    %v469 = vld [vmem:[%s2 + $0x6] sm:$0x1]
    %v470 = vlaneseq
    %v471 = vshrl.u32 %v470, 7
    %v472 = vsub.s32 0, %v471
    %v473 = vrot.slane %v469, %v472
    %vm474 = vcmask 130048
    %v476 = vsel %vm474, %v466, 0
    %478 = vmatprep.subr.mxu0 0.0
    %479 = vmatpush1.msra.mxu0 0.0
    %480 = vmatprep.subr.mxu0 0.0
    %481 = vmatpush1.msra.mxu0 0.0
    %482 = vmatprep.subr.mxu0 0.0
    %483 = vmatpush1.msra.mxu0 0.0
    %484 = vmatprep.subr.mxu0 0.0
    %485 = vmatpush1.msra.mxu0 0.0
    %486 = vmatprep.subr.mxu0 0.0
    %487 = vmatpush1.msra.mxu0 0.0
    %488 = vmatprep.subr.mxu0 0.0
    %489 = vmatpush1.msra.mxu0 0.0
    %490 = vmatprep.subr.mxu0 0.0
    %491 = vmatpush1.msra.mxu0 0.0
    %492 = vmatprep.subr.mxu0 0.0
    %493 = vmatpush1.msra.mxu0 0.0
    %494 = vmatprep.subr.mxu0 0.0
    %495 = vmatpush1.msra.mxu0 0.0
    %496 = vmatprep.subr.mxu0 0.0
    %497 = vmatpush1.msra.mxu0 0.0
    %498 = vmatprep.subr.mxu0 0.0
    %499 = vmatpush1.msra.mxu0 0.0
    %500 = vmatprep.subr.mxu0 0.0
    %501 = vmatpush1.msra.mxu0 0.0
    %502 = vmatprep.subr.mxu0 0.0
    %503 = vmatpush1.msra.mxu0 0.0
    %504 = vmatprep.subr.mxu0 0.0
    %505 = vmatpush1.msra.mxu0 0.0
    %506 = vmatprep.subr.mxu0 0.0
    %507 = vmatpush1.msra.mxu0 %v468
    %508 = vmatprep.subr.mxu0 0.0
    %509 = vmatpush1.msra.mxu0 %v467
    %510 = vmatprep.subr.mxu0 0.0
    %511 = vmatpush2.msra.mxu0 0.0
    %512 = vmatprep.subr.mxu0 0.0
    %513 = vmatpush2.msra.mxu0 0.0
    %514 = vmatprep.subr.mxu0 0.0
    %515 = vmatpush2.msra.mxu0 0.0
    %516 = vmatprep.subr.mxu0 0.0
    %517 = vmatpush2.msra.mxu0 0.0
    %518 = vmatprep.subr.mxu0 0.0
    %519 = vmatpush2.msra.mxu0 0.0
    %520 = vmatprep.subr.mxu0 0.0
    %521 = vmatpush2.msra.mxu0 0.0
    %522 = vmatprep.subr.mxu0 0.0
    %523 = vmatpush2.msra.mxu0 0.0
    %524 = vmatprep.subr.mxu0 0.0
    %525 = vmatpush2.msra.mxu0 0.0
    %526 = vmatprep.subr.mxu0 0.0
    %527 = vmatpush2.msra.mxu0 0.0
    %528 = vmatprep.subr.mxu0 0.0
    %529 = vmatpush2.msra.mxu0 0.0
    %530 = vmatprep.subr.mxu0 0.0
    %531 = vmatpush2.msra.mxu0 0.0
    %532 = vmatprep.subr.mxu0 0.0
    %533 = vmatpush2.msra.mxu0 0.0
    %534 = vmatprep.subr.mxu0 0.0
    %535 = vmatpush2.msra.mxu0 0.0
    %536 = vmatprep.subr.mxu0 0.0
    %537 = vmatpush2.msra.mxu0 0.0
    %538 = vmatprep.subr.mxu0 0.0
    %539 = vmatpush2.msra.mxu0 0.0
    %540 = vmatprep.subr.mxu0 0.0
    %541 = vmatpush2.msra.mxu0 0.0
    %542 = vmatprep.mubr.f32.mxu0 0.0
    %543 = vmatmul.mubr.f32.gmra.mxu0 %v476
    %v544 = vpop.f32.mrf.mxu0
    %v545 = vadd.f32 %v473, %v544
    %v546 = vpop.f32.mrf.mxu0
    %547 = vdwg.mxu0
    %vm548 = vcmask 17408
    %549 = vst.msk [vmem:[#allocation2] sm:$0x3] %vm548, %v545
    // Predicated region
    $region14: #{cnn2_forward.1} parent=1 // pred_check
      _
    $region15: #{cnn2_forward.1} parent=1 // pred_check_branch
      %551 = sbr.rel (0) target = $region17
    $region16: #{cnn2_forward.1} parent=1 // pred_region
      %s553 = ssub.s32 32, 32
      %554 = vsyncadd [#allocation3], %s553
      %s556 = sshll.u32 [#allocation2], 4
      %s557 = int_to_ptr.vmem [resolvable:$true] %s556
      %559 = dma.vmem_to_hbm [thread:$0]  %s557, 32, %s3, [#allocation3]
    $region17: #{cnn2_forward.1} parent=1 // pred_fallthru
      _
    // Predicated region
    $region18: #{cnn2_forward.1} parent=1 // pred_check
      _
    $region19: #{cnn2_forward.1} parent=1 // pred_check_branch
      %561 = sbr.rel (0) target = $region21
    $region20: #{cnn2_forward.1} parent=1 // pred_region
      %562 = dma.done [#allocation3], 32
    $region21: #{cnn2_forward.1} parent=1 // pred_fallthru
      _
    %563 = vsyncpa [#allocation3], 1

</llo_original>
